<compile_context>
chip_gen: v5e
topology: v5e:2x2
jax: 0.10.0
libtpu: 0.0.40
codegen_flags: <defaults>
</compile_context>

<pallas_src>
import math
import functools

import jax
import jax.numpy as jnp
from jax.experimental import pallas as pl
from jax.experimental.pallas import tpu as pltpu

MIN_NORM = 1e-15
EPS_F32 = 4e-3  # PoincareBall.eps[torch.float32]


def _cdiv(a, b):
    return -(-a // b)


def _round_up(a, b):
    return _cdiv(a, b) * b


# ---------------------------------------------------------------------------
# Shared scalar math
# ---------------------------------------------------------------------------
def _artanh(x):
    # The PyTorch reference clamps to 1 - 1e-15, which rounds to exactly 1.0 in f32
    # (-> inf).  1e-7 is bit-identical for valid in-ball inputs (sqrt(c)*||x|| <= 0.996
    # after proj) and avoids inf/NaN for padded garbage rows.
    x = jnp.clip(x, -1.0 + 1e-7, 1.0 - 1e-7)
    return 0.5 * (jnp.log1p(x) - jnp.log1p(-x))


def _tanh(x):
    return jnp.tanh(jnp.clip(x, -15.0, 15.0))


def _row_norm(x):
    return jnp.maximum(jnp.sqrt(jnp.sum(x * x, axis=-1, keepdims=True)), MIN_NORM)


# ---------------------------------------------------------------------------
# Pure-JAX helpers (layer prep + reference), faithful to the PyTorch manifold code
# ---------------------------------------------------------------------------
def _proj_ref(x, c):
    norm = _row_norm(x)
    maxnorm = (1.0 - EPS_F32) / jnp.sqrt(jnp.float32(c))
    return jnp.where(norm > maxnorm, x / norm * maxnorm, x)


def _expmap0_ref(u, c):
    sqrt_c = jnp.sqrt(jnp.float32(c))
    u_norm = _row_norm(u)
    return _tanh(sqrt_c * u_norm) * u / (sqrt_c * u_norm)


def _mobius_add_ref(x, y, c):
    c = jnp.float32(c)
    x2 = jnp.sum(x * x, axis=-1, keepdims=True)
    y2 = jnp.sum(y * y, axis=-1, keepdims=True)
    xy = jnp.sum(x * y, axis=-1, keepdims=True)
    num = (1.0 + 2.0 * c * xy + c * y2) * x + (1.0 - c * x2) * y
    denom = 1.0 + 2.0 * c * xy + c * c * x2 * y2
    return num / jnp.maximum(denom, MIN_NORM)


def hyp_linear_ref(x, weight, bias, *, c=1.0, use_bias=True):
    x = x.astype(jnp.float32)
    sqrt_c = jnp.sqrt(jnp.float32(c))
    x_norm = _row_norm(x)
    mx = x @ weight.T.astype(jnp.float32)
    mx_norm = _row_norm(mx)
    res_c = _tanh(mx_norm / x_norm * _artanh(sqrt_c * x_norm)) * mx / (mx_norm * sqrt_c)
    res = jnp.where(jnp.all(mx == 0.0, axis=-1, keepdims=True), 0.0, res_c)
    res = _proj_ref(res, c)
    if use_bias:
        hyp_bias = _proj_ref(_expmap0_ref(bias.reshape(1, -1).astype(jnp.float32), c), c)
        res = _proj_ref(_mobius_add_ref(res, hyp_bias, c), c)
    return res


# ---------------------------------------------------------------------------
# One-time hardware / feature detection (NOT on the hot path)
# ---------------------------------------------------------------------------
_DEV_VMEM_BYTES = None


def _device_vmem_bytes():
    global _DEV_VMEM_BYTES
    if _DEV_VMEM_BYTES is None:
        try:
            _DEV_VMEM_BYTES = int(pltpu.get_tpu_info().vmem_capacity_bytes)
        except Exception:
            _DEV_VMEM_BYTES = 64 << 20  # conservative: v7x per-TensorCore VMEM
    return _DEV_VMEM_BYTES


_BUFFERED_OK = None


def _buffered_supported():
    """One-time probe: does this jax build accept BlockSpec(pipeline_mode=pl.Buffered)?"""
    global _BUFFERED_OK
    if _BUFFERED_OK is None:
        try:
            def _probe(x_ref, o_ref):
                o_ref[...] = x_ref[...] * 2.0

            y = pl.pallas_call(
                _probe,
                out_shape=jax.ShapeDtypeStruct((8, 128), jnp.float32),
                grid=(1,),
                in_specs=[pl.BlockSpec((8, 128), lambda i: (0, 0),
                                       pipeline_mode=pl.Buffered(1))],
                out_specs=pl.BlockSpec((8, 128), lambda i: (0, 0)),
            )(jnp.ones((8, 128), jnp.float32))
            _BUFFERED_OK = bool(jnp.allclose(jax.block_until_ready(y), 2.0))
        except Exception:
            _BUFFERED_OK = False
    return _BUFFERED_OK


# ---------------------------------------------------------------------------
# Kernel
# ---------------------------------------------------------------------------
def _finalize(mx, x_sq, hb_ref, o_ref, *, c, use_bias):
    """Post-matmul hyperbolic math, all f32 (v5e has no bf16 VPU/EUP)."""
    f32 = jnp.float32
    sqrt_c = f32(math.sqrt(c))
    inv_sqrt_c = f32(1.0 / math.sqrt(c))
    maxnorm = f32((1.0 - EPS_F32) / math.sqrt(c))
    cf = f32(c)

    x_norm = jnp.maximum(jnp.sqrt(x_sq), MIN_NORM)                  # (tm, 1)
    mx_sq = jnp.sum(mx * mx, axis=-1, keepdims=True)                # (tm, 1) XLU reduce
    mx_norm = jnp.maximum(jnp.sqrt(mx_sq), MIN_NORM)

    # mobius_matvec per-row scale; the "W x == 0" rows are folded into the scalar.
    # (Reference tests all(mx == 0); sum-of-squares == 0 differs only on f32 underflow.)
    row_scale = _tanh(mx_norm * pl.reciprocal(x_norm) * _artanh(sqrt_c * x_norm)) \
        * (inv_sqrt_c * pl.reciprocal(mx_norm))
    row_scale = jnp.where(mx_sq == 0.0, 0.0, row_scale)

    # proj() folded into the same per-row scalar: ||row_scale * mx|| = |row_scale|*||mx||,
    # so no second full-width reduce / full-tile select is needed.
    res_norm = jnp.maximum(jnp.abs(row_scale) * mx_norm, MIN_NORM)
    scale = row_scale * jnp.where(res_norm > maxnorm,
                                  maxnorm * pl.reciprocal(res_norm), 1.0)
    res = scale * mx                                                # single full-tile multiply

    if use_bias:
        hb = hb_ref[...].astype(f32)                                # (1, out_fp) hyperbolic bias
        x2 = (scale * scale) * mx_sq                                # ||res||^2 from scalars
        y2 = jnp.sum(hb * hb, axis=-1, keepdims=True)               # (1, 1)
        xy = jnp.sum(res * hb, axis=-1, keepdims=True)              # (tm, 1) XLU reduce
        num = (1.0 + 2.0 * cf * xy + cf * y2) * res + (1.0 - cf * x2) * hb
        denom = 1.0 + 2.0 * cf * xy + cf * cf * x2 * y2
        res = num * pl.reciprocal(jnp.maximum(denom, MIN_NORM))
        # Final proj needs the true norm of the mobius_add result.
        nrm = jnp.maximum(jnp.sqrt(jnp.sum(res * res, axis=-1, keepdims=True)), MIN_NORM)
        res = res * jnp.where(nrm > maxnorm, maxnorm * pl.reciprocal(nrm), 1.0)

    o_ref[...] = res.astype(o_ref.dtype)


def _hyp_linear_kernel(x_ref, wt_ref, hb_ref, o_ref, *scratch,
                       c, use_bias, matmul_dtype, num_k):
    f32 = jnp.float32
    x = x_ref[...]                                                  # (tm, tk)
    wt = wt_ref[...]                                                # (tk, out_fp)

    if matmul_dtype is not None:                                    # bf16 MXU path (default)
        mx_part = jnp.dot(x.astype(matmul_dtype), wt.astype(matmul_dtype),
                          preferred_element_type=f32)
    else:
        mx_part = jnp.dot(x.astype(f32), wt.astype(f32), preferred_element_type=f32)
    xf = x.astype(f32)
    xsq_part = jnp.sum(xf * xf, axis=-1, keepdims=True)             # (tm, 1)

    if num_k == 1:
        _finalize(mx_part, xsq_part, hb_ref, o_ref, c=c, use_bias=use_bias)
    else:
        acc_ref, xsq_ref = scratch
        k = pl.program_id(1)

        @pl.when(k == 0)
        def _():
            acc_ref[...] = jnp.zeros_like(acc_ref)
            xsq_ref[...] = jnp.zeros_like(xsq_ref)

        acc_ref[...] += mx_part
        xsq_ref[...] += xsq_part

        @pl.when(k == num_k - 1)
        def _():
            _finalize(acc_ref[...], xsq_ref[...], hb_ref, o_ref,
                      c=c, use_bias=use_bias)


# ---------------------------------------------------------------------------
# Layer preparation (hoisted out of the per-call hot path)
# ---------------------------------------------------------------------------
def _prepare_params(weight, bias, *, c, use_bias, matmul_dtype, k_tile):
    weight = jnp.asarray(weight)
    out_f, in_f = weight.shape
    out_fp = _round_up(out_f, 128)                   # lane-dense output stores
    # Lane-dense contraction dim when it is already >= 128; for tiny in_f (e.g. 16)
    # the full-dim block is legal and padding 16 -> 128 would inflate x traffic ~8x.
    in_fp = _round_up(in_f, 128) if in_f >= 128 else in_f

    dev_vmem = _device_vmem_bytes()
    wsize = 4 if matmul_dtype is None else jnp.dtype(matmul_dtype).itemsize

    if k_tile is not None:
        tk = max(128, _round_up(int(k_tile), 128))
    elif in_fp * out_fp * wsize > dev_vmem // 4:
        # Resident weight slab would eat > 1/4 of VMEM (matters on v7x, 64 MiB): tile K.
        tk = max(128, ((dev_vmem // 4) // max(out_fp * wsize, 1)) // 128 * 128)
    else:
        tk = None

    if tk is not None and in_fp > tk:
        in_fp = _round_up(max(in_fp, 128), tk)
        num_k = in_fp // tk
    else:
        tk, num_k = None, 1

    # Weight stored transposed, padded, and (by default) in the MXU dtype (bf16),
    # so it is DMA'd / VMEM-resident at half width.
    wt = weight.T.astype(jnp.float32 if matmul_dtype is None else matmul_dtype)
    wt = jnp.pad(wt, ((0, in_fp - in_f), (0, out_fp - out_f)))

    # Hoisted bias transform: proj(expmap0(proj_tan0(bias))) computed once per layer
    # (proj_tan0 is identity on the Poincare ball).
    if use_bias and bias is not None:
        b = jnp.asarray(bias, jnp.float32).reshape(1, out_f)
        hb = _proj_ref(_expmap0_ref(b, c), c)
    else:
        hb = jnp.zeros((1, out_f), jnp.float32)
    hb = jnp.pad(hb, ((0, 0), (0, out_fp - out_f)))

    meta = dict(in_f=in_f, out_f=out_f, in_fp=in_fp, out_fp=out_fp,
                tk=(in_fp if tk is None else tk), num_k=num_k,
                use_buffered=_buffered_supported(), dev_vmem=dev_vmem)
    return wt, hb, meta


# ---------------------------------------------------------------------------
# Apply (jitted per layer)
# ---------------------------------------------------------------------------
def hyp_linear_apply(x, wt, hb, *, c, use_bias, matmul_dtype, tm, x_buffers, meta):
    in_f, out_f = meta["in_f"], meta["out_f"]
    in_fp, out_fp = meta["in_fp"], meta["out_fp"]
    tk, num_k = meta["tk"], meta["num_k"]
    use_buffered = meta["use_buffered"]
    dev_vmem = meta["dev_vmem"]

    n = x.shape[0]
    n_pad8 = _round_up(n, 8)
    xs = jnp.dtype(x.dtype).itemsize
    ws = jnp.dtype(wt.dtype).itemsize

    def vmem_need(tm_):
        need = (2 * tm_ * tk * xs                                   # x tiles (double-buffered)
                + 2 * tm_ * out_fp * xs                             # output tiles
                + (1 if (use_buffered and num_k == 1) else 2) * tk * out_fp * ws
                + 2 * 8 * out_fp * 4)                               # hyperbolic bias (tile-padded)
        if num_k > 1:
            need += tm_ * out_fp * 4 + tm_ * 128 * 4                # f32 accumulator scratch
        return need

    # Row tiling: >= 2 row tiles when N allows (spans v7x's 2 TensorCores), padding
    # waste bounded by < ~8 rows per tile, auto-shrink until the tile set fits VMEM.
    tm_req = max(8, _round_up(tm, 8))
    nrt = max(_cdiv(n_pad8, tm_req), min(2, _cdiv(n_pad8, 8)))
    tm_eff = _round_up(_cdiv(n_pad8, nrt), 8)
    while tm_eff > 8 and vmem_need(tm_eff) > dev_vmem - (8 << 20):
        tm_eff = _round_up(_cdiv(tm_eff, 2), 8)
    nrt = _cdiv(n_pad8, tm_eff)
    n_pad = nrt * tm_eff

    if n_pad != n or in_fp != in_f:
        x = jnp.pad(x, ((0, n_pad - n), (0, in_fp - in_f)))

    # VMEM limit: derived from the actual buffers and clamped to the device's VMEM
    # (v7x: 64 MiB) minus headroom, never the old fixed 100 MiB cap.
    vmem_limit = int(min(max(32 << 20, 2 * vmem_need(tm_eff) + (1 << 20)),
                         dev_vmem - (16 << 20)))

    const_kw = {"pipeline_mode": pl.Buffered(1)} if use_buffered else {}
    w_kw = const_kw if num_k == 1 else {}                    # weight varies over k when tiled
    x_kw = ({"pipeline_mode": pl.Buffered(int(x_buffers))}
            if (use_buffered and x_buffers is not None) else {})

    kernel = functools.partial(_hyp_linear_kernel, c=float(c), use_bias=bool(use_bias),
                               matmul_dtype=matmul_dtype, num_k=num_k)

    out = pl.pallas_call(
        kernel,
        out_shape=jax.ShapeDtypeStruct((n_pad, out_fp), x.dtype),
        grid=(nrt, num_k),
        in_specs=[
            pl.BlockSpec((tm_eff, tk), lambda i, k: (i, k), **x_kw),
            pl.BlockSpec((tk, out_fp), lambda i, k: (k, 0), **w_kw),
            pl.BlockSpec((1, out_fp), lambda i, k: (0, 0), **const_kw),
        ],
        out_specs=pl.BlockSpec((tm_eff, out_fp), lambda i, k: (i, 0)),
        scratch_shapes=([pltpu.VMEM((tm_eff, out_fp), jnp.float32),
                         pltpu.VMEM((tm_eff, 1), jnp.float32)] if num_k > 1 else []),
        compiler_params=pltpu.CompilerParams(
            dimension_semantics=("parallel", "arbitrary"),
            vmem_limit_bytes=vmem_limit),
    )(x, wt, hb)

    return out[:n, :out_f]


def make_hyp_linear(weight, bias=None, *, c=1.0, dropout=0.0, use_bias=True,
                    tm=256, matmul_dtype=jnp.bfloat16, k_tile=None, x_buffers=None):
    """Prepare a HypLinear layer once (transpose/pad/cast weight, hyperbolic bias)
    and return a jitted apply(x) -> (N, out_features).

    matmul_dtype: MXU dtype for the weight/matmul (default bf16, f32 accumulation);
                  pass None for a full f32 matmul path.
    x_buffers:    optional pipeline depth for the streaming x input (e.g. 3) if an
                  xprof trace shows exposed DMA; default leaves Pallas' default (2).
    """
    # Dropout on the weight is identity in eval mode (training=False).
    # TODO(synk): training-mode weight dropout (RNG mask on the weight) not emitted.
    del dropout
    wt, hb, meta = _prepare_params(weight, bias, c=c, use_bias=use_bias,
                                   matmul_dtype=matmul_dtype, k_tile=k_tile)

    @jax.jit
    def _run(x, wt_, hb_):
        return hyp_linear_apply(x, wt_, hb_, c=c, use_bias=use_bias,
                                matmul_dtype=matmul_dtype, tm=tm,
                                x_buffers=x_buffers, meta=meta)

    def apply(x):
        return _run(x, wt, hb)

    return apply


def hyp_linear(x, weight, bias=None, *, c=1.0, use_bias=True, **kwargs):
    """One-shot convenience wrapper (layer prep not hoisted; prefer make_hyp_linear)."""
    return make_hyp_linear(weight, bias, c=c, use_bias=use_bias, **kwargs)(x)


# ---------------------------------------------------------------------------
# Self-test
# ---------------------------------------------------------------------------
if __name__ == "__main__":
    key = jax.random.PRNGKey(0)
    c = 1.0
    n, in_f, out_f = 64, 16, 32
    kx, kw, kb, kx2 = jax.random.split(key, 4)

    # Inputs: points inside the Poincare ball.
    x = 0.1 * jax.random.normal(kx, (n, in_f), dtype=jnp.float32)

    # Parameter init per HypLinear.reset_parameters():
    #   xavier_uniform_(weight, gain=sqrt(2)); constant_(bias, 0)
    gain = math.sqrt(2.0)
    bound = gain * math.sqrt(6.0 / (in_f + out_f))
    weight = jax.random.uniform(kw, (out_f, in_f), dtype=jnp.float32,
                                minval=-bound, maxval=bound)
    bias0 = jnp.zeros((out_f,), dtype=jnp.float32)

    # 1) strict check, f32 MXU path, zero bias (the module's default init).
    layer = make_hyp_linear(weight, bias0, c=c, use_bias=True, matmul_dtype=None)
    out = jax.block_until_ready(layer(x))
    ref = hyp_linear_ref(x, weight, bias0, c=c, use_bias=True)
    assert out.shape == (n, out_f)
    assert jnp.allclose(out, ref, atol=1e-5, rtol=1e-5), "mismatch (f32, zero bias)"

    # 2) strict check, f32 MXU path, random bias + row count with a padded tail.
    n2 = 50
    x2 = 0.1 * jax.random.normal(kx2, (n2, in_f), dtype=jnp.float32)
    bias2 = 0.05 * jax.random.normal(kb, (out_f,), dtype=jnp.float32)
    layer2 = make_hyp_linear(weight, bias2, c=c, use_bias=True, matmul_dtype=None)
    out2 = jax.block_until_ready(layer2(x2))
    ref2 = hyp_linear_ref(x2, weight, bias2, c=c, use_bias=True)
    assert out2.shape == (n2, out_f)
    assert jnp.allclose(out2, ref2, atol=1e-5, rtol=1e-5), "mismatch (f32, rand bias)"

    # 3) default bf16 MXU path (bf16-stored weight, f32 accumulation + hyperbolic math).
    layer3 = make_hyp_linear(weight, bias2, c=c, use_bias=True)  # matmul_dtype=bf16
    out3 = jax.block_until_ready(layer3(x2))
    assert out3.shape == (n2, out_f)
    assert bool(jnp.all(jnp.isfinite(out3)))
    assert jnp.allclose(out3, ref2, atol=5e-3, rtol=5e-2), "mismatch (bf16 matmul)"

    # 4) K-tiled accumulator path (forced small k tile; exercises the v7x large-weight path).
    n4, in_f4, out_f4 = 40, 256, 32
    kk = jax.random.split(kb, 3)
    x4 = 0.05 * jax.random.normal(kk[0], (n4, in_f4), dtype=jnp.float32)
    bound4 = gain * math.sqrt(6.0 / (in_f4 + out_f4))
    w4 = jax.random.uniform(kk[1], (out_f4, in_f4), dtype=jnp.float32,
                            minval=-bound4, maxval=bound4)
    b4 = 0.05 * jax.random.normal(kk[2], (out_f4,), dtype=jnp.float32)
    layer4 = make_hyp_linear(w4, b4, c=c, use_bias=True, matmul_dtype=None, k_tile=128)
    out4 = jax.block_until_ready(layer4(x4))
    ref4 = hyp_linear_ref(x4, w4, b4, c=c, use_bias=True)
    assert out4.shape == (n4, out_f4)
    assert jnp.allclose(out4, ref4, atol=1e-3, rtol=1e-2), "mismatch (K-tiled path)"

    print("KERNEL_OK")
</pallas_src>

<mosaic_0001>
module attributes {stable_mosaic.version = 11 : i64} {
  func.func @_probe(%arg0: i32, %arg1: memref<8x128xf32, #tpu.memory_space<vmem>>, %arg2: memref<8x128xf32, #tpu.memory_space<vmem>>) attributes {dimension_semantics = [#tpu.dimension_semantics<arbitrary>], iteration_bounds = array<i64: 1>, scalar_prefetch = 0 : i64, scratch_operands = 0 : i64, tpu.core_type = #tpu.core_type<tc>, window_params = [{pipeline_mode = #tpu.pipeline_mode<synchronous>, transform_indices = @transform_0, window_bounds = array<i64: 8, 128>}, {pipeline_mode = #tpu.pipeline_mode<synchronous>, transform_indices = @transform_1, window_bounds = array<i64: 8, 128>}]} {
    %c0 = arith.constant 0 : index
    %c0_0 = arith.constant 0 : index
    %0 = vector.load %arg1[%c0, %c0_0] : memref<8x128xf32, #tpu.memory_space<vmem>>, vector<8x128xf32>
    %cst = arith.constant 2.000000e+00 : f32
    %1 = vector.broadcast %cst : f32 to vector<8x128xf32>
    %2 = arith.mulf %0, %1 : vector<8x128xf32>
    %c0_1 = arith.constant 0 : index
    %c0_2 = arith.constant 0 : index
    %3 = vector.load %arg2[%c0_1, %c0_2] : memref<8x128xf32, #tpu.memory_space<vmem>>, vector<8x128xf32>
    tpu.vector_store %arg2[%c0_1, %c0_2], %2 {strides = array<i32>} : memref<8x128xf32, #tpu.memory_space<vmem>>, vector<8x128xf32>,
    return
  }
  func.func @transform_0(%arg0: i32) -> (i32, i32) {
    %c0_i32 = arith.constant 0 : i32
    %c0_i32_0 = arith.constant 0 : i32
    %c0_i32_1 = arith.constant 0 : i32
    return %c0_i32, %c0_i32_0 : i32, i32
  }
  func.func @transform_1(%arg0: i32) -> (i32, i32) {
    %c0_i32 = arith.constant 0 : i32
    %c0_i32_0 = arith.constant 0 : i32
    %c0_i32_1 = arith.constant 0 : i32
    return %c0_i32, %c0_i32_0 : i32, i32
  }
}

module attributes {stable_mosaic.version = 11 : i64} {
  func.func @_hyp_linear_kernel(%arg0: i32, %arg1: i32, %arg2: memref<32x16xf32, #tpu.memory_space<vmem>>, %arg3: memref<16x128xf32, #tpu.memory_space<vmem>>, %arg4: memref<1x128xf32, #tpu.memory_space<vmem>>, %arg5: memref<32x128xf32, #tpu.memory_space<vmem>>) attributes {dimension_semantics = [#tpu.dimension_semantics<parallel>, #tpu.dimension_semantics<arbitrary>], iteration_bounds = array<i64: 2, 1>, scalar_prefetch = 0 : i64, scratch_operands = 0 : i64, tpu.core_type = #tpu.core_type<tc>, window_params = [{transform_indices = @transform_0, window_bounds = array<i64: 32, 16>}, {transform_indices = @transform_1, window_bounds = array<i64: 16, 128>}, {pipeline_mode = #tpu.pipeline_mode<synchronous>, transform_indices = @transform_2, window_bounds = array<i64: 1, 128>}, {transform_indices = @transform_3, window_bounds = array<i64: 32, 128>}]} {
    %c0 = arith.constant 0 : index
    %c0_0 = arith.constant 0 : index
    %0 = vector.load %arg2[%c0, %c0_0] : memref<32x16xf32, #tpu.memory_space<vmem>>, vector<32x16xf32>
    %c0_1 = arith.constant 0 : index
    %c0_2 = arith.constant 0 : index
    %1 = vector.load %arg3[%c0_1, %c0_2] : memref<16x128xf32, #tpu.memory_space<vmem>>, vector<16x128xf32>
    %cst = arith.constant dense<0.000000e+00> : vector<32x128xf32>
    %2 = tpu.matmul %0, %1, %cst {dimension_numbers = #tpu.dot_dimension_numbers<[1], [0], [0], [1], [0, 0, 1, 1], [], []>} : vector<32x16xf32>, vector<16x128xf32>, vector<32x128xf32> -> vector<32x128xf32>
    %3 = arith.mulf %0, %0 : vector<32x16xf32>
    %cst_3 = arith.constant dense<0.000000e+00> : vector<32xf32>
    %4 = vector.multi_reduction <add>, %3, %cst_3 [1] : vector<32x16xf32> to vector<32xf32>
    %5 = vector.shape_cast %4 : vector<32xf32> to vector<32x1xf32>
    %6 = math.sqrt %5 : vector<32x1xf32>
    %cst_4 = arith.constant 1.000000e-15 : f32
    %7 = vector.broadcast %cst_4 : f32 to vector<32x1xf32>
    %8 = arith.maximumf %6, %7 : vector<32x1xf32>
    %9 = arith.mulf %2, %2 : vector<32x128xf32>
    %cst_5 = arith.constant dense<0.000000e+00> : vector<32xf32>
    %10 = vector.multi_reduction <add>, %9, %cst_5 [1] : vector<32x128xf32> to vector<32xf32>
    %11 = vector.shape_cast %10 : vector<32xf32> to vector<32x1xf32>
    %12 = math.sqrt %11 : vector<32x1xf32>
    %cst_6 = arith.constant 1.000000e-15 : f32
    %13 = vector.broadcast %cst_6 : f32 to vector<32x1xf32>
    %14 = arith.maximumf %12, %13 : vector<32x1xf32>
    %15 = tpu.reciprocal %8 : vector<32x1xf32> -> vector<32x1xf32>
    %16 = arith.mulf %14, %15 : vector<32x1xf32>
    %cst_7 = arith.constant 1.000000e+00 : f32
    %17 = vector.broadcast %cst_7 : f32 to vector<32x1xf32>
    %18 = arith.mulf %17, %8 : vector<32x1xf32>
    %cst_8 = arith.constant -0.99999988 : f32
    %cst_9 = arith.constant 0.99999988 : f32
    %19 = vector.broadcast %cst_8 : f32 to vector<32x1xf32>
    %20 = arith.maximumf %19, %18 : vector<32x1xf32>
    %21 = vector.broadcast %cst_9 : f32 to vector<32x1xf32>
    %22 = arith.minimumf %21, %20 : vector<32x1xf32>
    %23 = math.log1p %22 : vector<32x1xf32>
    %cst_10 = arith.constant 0.000000e+00 : f32
    %24 = vector.broadcast %cst_10 : f32 to vector<32x1xf32>
    %25 = arith.subf %24, %22 : vector<32x1xf32>
    %26 = math.log1p %25 : vector<32x1xf32>
    %27 = arith.subf %23, %26 : vector<32x1xf32>
    %cst_11 = arith.constant 5.000000e-01 : f32
    %28 = vector.broadcast %cst_11 : f32 to vector<32x1xf32>
    %29 = arith.mulf %28, %27 : vector<32x1xf32>
    %30 = arith.mulf %16, %29 : vector<32x1xf32>
    %cst_12 = arith.constant -1.500000e+01 : f32
    %cst_13 = arith.constant 1.500000e+01 : f32
    %31 = vector.broadcast %cst_12 : f32 to vector<32x1xf32>
    %32 = arith.maximumf %31, %30 : vector<32x1xf32>
    %33 = vector.broadcast %cst_13 : f32 to vector<32x1xf32>
    %34 = arith.minimumf %33, %32 : vector<32x1xf32>
    %35 = math.tanh %34 : vector<32x1xf32>
    %36 = tpu.reciprocal %14 : vector<32x1xf32> -> vector<32x1xf32>
    %cst_14 = arith.constant 1.000000e+00 : f32
    %37 = vector.broadcast %cst_14 : f32 to vector<32x1xf32>
    %38 = arith.mulf %37, %36 : vector<32x1xf32>
    %39 = arith.mulf %35, %38 : vector<32x1xf32>
    %cst_15 = arith.constant 0.000000e+00 : f32
    %40 = vector.broadcast %cst_15 : f32 to vector<32x1xf32>
    %41 = arith.cmpf oeq, %11, %40 : vector<32x1xf32>
    %cst_16 = arith.constant 0.000000e+00 : f32
    %42 = vector.broadcast %cst_16 : f32 to vector<32x1xf32>
    %43 = arith.select %41, %42, %39 : vector<32x1xi1>, vector<32x1xf32>
    %44 = math.absf %43 : vector<32x1xf32>
    %45 = arith.mulf %44, %14 : vector<32x1xf32>
    %cst_17 = arith.constant 1.000000e-15 : f32
    %46 = vector.broadcast %cst_17 : f32 to vector<32x1xf32>
    %47 = arith.maximumf %45, %46 : vector<32x1xf32>
    %cst_18 = arith.constant 0.995999991 : f32
    %48 = vector.broadcast %cst_18 : f32 to vector<32x1xf32>
    %49 = arith.cmpf ogt, %47, %48 : vector<32x1xf32>
    %50 = tpu.reciprocal %47 : vector<32x1xf32> -> vector<32x1xf32>
    %cst_19 = arith.constant 0.995999991 : f32
    %51 = vector.broadcast %cst_19 : f32 to vector<32x1xf32>
    %52 = arith.mulf %51, %50 : vector<32x1xf32>
    %cst_20 = arith.constant 1.000000e+00 : f32
    %53 = vector.broadcast %cst_20 : f32 to vector<32x1xf32>
    %54 = arith.select %49, %52, %53 : vector<32x1xi1>, vector<32x1xf32>
    %55 = arith.mulf %43, %54 : vector<32x1xf32>
    %56 = vector.broadcast %55 : vector<32x1xf32> to vector<32x128xf32>
    %57 = arith.mulf %56, %2 : vector<32x128xf32>
    %c0_21 = arith.constant 0 : index
    %c0_22 = arith.constant 0 : index
    %58 = vector.load %arg4[%c0_21, %c0_22] : memref<1x128xf32, #tpu.memory_space<vmem>>, vector<1x128xf32>
    %59 = arith.mulf %55, %55 : vector<32x1xf32>
    %60 = arith.mulf %59, %11 : vector<32x1xf32>
    %61 = arith.mulf %58, %58 : vector<1x128xf32>
    %cst_23 = arith.constant dense<0.000000e+00> : vector<1xf32>
    %62 = vector.multi_reduction <add>, %61, %cst_23 [1] : vector<1x128xf32> to vector<1xf32>
    %63 = vector.shape_cast %62 : vector<1xf32> to vector<1x1xf32>
    %64 = vector.broadcast %58 : vector<1x128xf32> to vector<32x128xf32>
    %65 = arith.mulf %57, %64 : vector<32x128xf32>
    %cst_24 = arith.constant dense<0.000000e+00> : vector<32xf32>
    %66 = vector.multi_reduction <add>, %65, %cst_24 [1] : vector<32x128xf32> to vector<32xf32>
    %67 = vector.shape_cast %66 : vector<32xf32> to vector<32x1xf32>
    %cst_25 = arith.constant 2.000000e+00 : f32
    %cst_26 = arith.constant 1.000000e+00 : f32
    %68 = arith.mulf %cst_25, %cst_26 : f32
    %69 = vector.broadcast %68 : f32 to vector<32x1xf32>
    %70 = arith.mulf %69, %67 : vector<32x1xf32>
    %cst_27 = arith.constant 1.000000e+00 : f32
    %71 = vector.broadcast %cst_27 : f32 to vector<32x1xf32>
    %72 = arith.addf %71, %70 : vector<32x1xf32>
    %cst_28 = arith.constant 1.000000e+00 : f32
    %73 = vector.broadcast %cst_28 : f32 to vector<1x1xf32>
    %74 = arith.mulf %73, %63 : vector<1x1xf32>
    %75 = vector.broadcast %74 : vector<1x1xf32> to vector<32x1xf32>
    %76 = arith.addf %72, %75 : vector<32x1xf32>
    %77 = vector.broadcast %76 : vector<32x1xf32> to vector<32x128xf32>
    %78 = arith.mulf %77, %57 : vector<32x128xf32>
    %cst_29 = arith.constant 1.000000e+00 : f32
    %79 = vector.broadcast %cst_29 : f32 to vector<32x1xf32>
    %80 = arith.mulf %79, %60 : vector<32x1xf32>
    %cst_30 = arith.constant 1.000000e+00 : f32
    %81 = vector.broadcast %cst_30 : f32 to vector<32x1xf32>
    %82 = arith.subf %81, %80 : vector<32x1xf32>
    %83 = vector.broadcast %82 : vector<32x1xf32> to vector<32x128xf32>
    %84 = vector.broadcast %58 : vector<1x128xf32> to vector<32x128xf32>
    %85 = arith.mulf %83, %84 : vector<32x128xf32>
    %86 = arith.addf %78, %85 : vector<32x128xf32>
    %cst_31 = arith.constant 2.000000e+00 : f32
    %cst_32 = arith.constant 1.000000e+00 : f32
    %87 = arith.mulf %cst_31, %cst_32 : f32
    %88 = vector.broadcast %87 : f32 to vector<32x1xf32>
    %89 = arith.mulf %88, %67 : vector<32x1xf32>
    %cst_33 = arith.constant 1.000000e+00 : f32
    %90 = vector.broadcast %cst_33 : f32 to vector<32x1xf32>
    %91 = arith.addf %90, %89 : vector<32x1xf32>
    %cst_34 = arith.constant 1.000000e+00 : f32
    %cst_35 = arith.constant 1.000000e+00 : f32
    %92 = arith.mulf %cst_34, %cst_35 : f32
    %93 = vector.broadcast %92 : f32 to vector<32x1xf32>
    %94 = arith.mulf %93, %60 : vector<32x1xf32>
    %95 = vector.broadcast %63 : vector<1x1xf32> to vector<32x1xf32>
    %96 = arith.mulf %94, %95 : vector<32x1xf32>
    %97 = arith.addf %91, %96 : vector<32x1xf32>
    %cst_36 = arith.constant 1.000000e-15 : f32
    %98 = vector.broadcast %cst_36 : f32 to vector<32x1xf32>
    %99 = arith.maximumf %97, %98 : vector<32x1xf32>
    %100 = tpu.reciprocal %99 : vector<32x1xf32> -> vector<32x1xf32>
    %101 = vector.broadcast %100 : vector<32x1xf32> to vector<32x128xf32>
    %102 = arith.mulf %86, %101 : vector<32x128xf32>
    %103 = arith.mulf %102, %102 : vector<32x128xf32>
    %cst_37 = arith.constant dense<0.000000e+00> : vector<32xf32>
    %104 = vector.multi_reduction <add>, %103, %cst_37 [1] : vector<32x128xf32> to vector<32xf32>
    %105 = vector.shape_cast %104 : vector<32xf32> to vector<32x1xf32>
    %106 = math.sqrt %105 : vector<32x1xf32>
    %cst_38 = arith.constant 1.000000e-15 : f32
    %107 = vector.broadcast %cst_38 : f32 to vector<32x1xf32>
    %108 = arith.maximumf %106, %107 : vector<32x1xf32>
    %cst_39 = arith.constant 0.995999991 : f32
    %109 = vector.broadcast %cst_39 : f32 to vector<32x1xf32>
    %110 = arith.cmpf ogt, %108, %109 : vector<32x1xf32>
    %111 = tpu.reciprocal %108 : vector<32x1xf32> -> vector<32x1xf32>
    %cst_40 = arith.constant 0.995999991 : f32
    %112 = vector.broadcast %cst_40 : f32 to vector<32x1xf32>
    %113 = arith.mulf %112, %111 : vector<32x1xf32>
    %cst_41 = arith.constant 1.000000e+00 : f32
    %114 = vector.broadcast %cst_41 : f32 to vector<32x1xf32>
    %115 = arith.select %110, %113, %114 : vector<32x1xi1>, vector<32x1xf32>
    %116 = vector.broadcast %115 : vector<32x1xf32> to vector<32x128xf32>
    %117 = arith.mulf %102, %116 : vector<32x128xf32>
    %c0_42 = arith.constant 0 : index
    %c0_43 = arith.constant 0 : index
    %118 = vector.load %arg5[%c0_42, %c0_43] : memref<32x128xf32, #tpu.memory_space<vmem>>, vector<32x128xf32>
    tpu.vector_store %arg5[%c0_42, %c0_43], %117 {strides = array<i32>} : memref<32x128xf32, #tpu.memory_space<vmem>>, vector<32x128xf32>,
    return
  }
  func.func @transform_0(%arg0: i32, %arg1: i32) -> (i32, i32) {
    %c0_i32 = arith.constant 0 : i32
    return %arg0, %arg1 : i32, i32
  }
  func.func @transform_1(%arg0: i32, %arg1: i32) -> (i32, i32) {
    %c0_i32 = arith.constant 0 : i32
    %c0_i32_0 = arith.constant 0 : i32
    return %arg1, %c0_i32 : i32, i32
  }
  func.func @transform_2(%arg0: i32, %arg1: i32) -> (i32, i32) {
    %c0_i32 = arith.constant 0 : i32
    %c0_i32_0 = arith.constant 0 : i32
    %c0_i32_1 = arith.constant 0 : i32
    return %c0_i32, %c0_i32_0 : i32, i32
  }
  func.func @transform_3(%arg0: i32, %arg1: i32) -> (i32, i32) {
    %c0_i32 = arith.constant 0 : i32
    %c0_i32_0 = arith.constant 0 : i32
    return %arg0, %c0_i32 : i32, i32
  }
}

</mosaic_0001>

<llo_original>
// kernel: tpu_custom_call.1
$region0: #{tpu_custom_call.1}
  #allocation0 [shape = 'u32[]', space=smem, size = 0x4, offset = 0x4, fixed_abs, tag = 'smem constant byte address 0x4 - core index']
  #allocation1 [shape = 'u32[72,128]{1,0:T(1,128)}', space=vmem, size = 0x9000, scoped, tag = 'internal scratch']
  %s0 = inlined_call_operand.hbm [shape: f32[8,128], index: 0, kind: input, shape index: {}]
  %s1 = inlined_call_operand.hbm [shape: f32[8,128], index: 1, kind: output, shape index: {}]
  %s2 = sld [smem:[#allocation0]]
  $region18: #{tpu_custom_call.1} parent=0
    _
  %s4 = ssub.s32 1, %s2
  %s5 = scalar_select 0, %s4, %s2
  $region1: #{tpu_custom_call.1} parent=0
    #allocation2 [shape = 'u8[4096]{0}', space=vmem, size = 0x1000, scoped, tag = 'input window, operand 0, single buffered']
    #allocation3 [shape = 's32[1]{0}', space=sflag, size = 0x4, scoped, tag = 'scoped memory for tpu_custom_call.1']
    #allocation4 [shape = 's32[1]{0}', space=sflag, size = 0x4, scoped, tag = 'scoped memory for tpu_custom_call.1']
    #allocation5 [shape = 'u8[4096]{0}', space=vmem, size = 0x1000, scoped, tag = 'output window, operand 0, single buffered']
    %6 = vsyncpa [#allocation3], 0
    %7 = vsyncpa [#allocation4], 0
    // Predicated region
    $region2: #{tpu_custom_call.1} parent=1 // pred_check
      _
    $region3: #{tpu_custom_call.1} parent=1 // pred_check_branch
      %9 = sbr.rel (0) target = $region5
    $region4: #{tpu_custom_call.1} parent=1 // pred_region
      %11 = vsyncadd [#allocation3], 0
      %s13 = sshll.u32 %s0, 4
      %s14 = int_to_ptr.hbm [resolvable:$true] %s13
      %s15 = sshll.u32 [#allocation2], 4
      %s16 = int_to_ptr.vmem [resolvable:$true] %s15
      %18 = dma.hbm_to_vmem [thread:$0]  %s14, 128, %s16, [#allocation3]
    $region5: #{tpu_custom_call.1} parent=1 // pred_fallthru
      _
    // Predicated region
    $region6: #{tpu_custom_call.1} parent=1 // pred_check
      _
    $region7: #{tpu_custom_call.1} parent=1 // pred_check_branch
      %20 = sbr.rel (0) target = $region9
    $region8: #{tpu_custom_call.1} parent=1 // pred_region
      %22 = dma.done [#allocation3], 128
    $region9: #{tpu_custom_call.1} parent=1 // pred_fallthru
      _
    %v23 = vld [vmem:[#allocation2] sm:$0xff]
    %v24 = vmul.f32 %v23, 2.0
    %25 = vst [vmem:[#allocation5] sm:$0xff] %v24
    // Predicated region
    $region10: #{tpu_custom_call.1} parent=1 // pred_check
      _
    $region11: #{tpu_custom_call.1} parent=1 // pred_check_branch
      %27 = sbr.rel (0) target = $region13
    $region12: #{tpu_custom_call.1} parent=1 // pred_region
      %29 = vsyncadd [#allocation4], 0
      %s31 = sshll.u32 [#allocation5], 4
      %s32 = int_to_ptr.vmem [resolvable:$true] %s31
      %s33 = sshll.u32 %s1, 4
      %s34 = int_to_ptr.hbm [resolvable:$true] %s33
      %36 = dma.vmem_to_hbm [thread:$0]  %s32, 128, %s34, [#allocation4]
    $region13: #{tpu_custom_call.1} parent=1 // pred_fallthru
      _
    // Predicated region
    $region14: #{tpu_custom_call.1} parent=1 // pred_check
      _
    $region15: #{tpu_custom_call.1} parent=1 // pred_check_branch
      %38 = sbr.rel (0) target = $region17
    $region16: #{tpu_custom_call.1} parent=1 // pred_region
      %40 = dma.done [#allocation4], 128
    $region17: #{tpu_custom_call.1} parent=1 // pred_fallthru
      _
    %41 = vsyncpa [#allocation3], 1
    %42 = vsyncpa [#allocation4], 1

// kernel: _run.1
$region0: #{_run.1}
  #allocation0 [shape = 'u32[]', space=smem, size = 0x4, offset = 0x4, fixed_abs, tag = 'smem constant byte address 0x4 - core index']
  #allocation1 [shape = 'u32[72,128]{1,0:T(1,128)}', space=vmem, size = 0x9000, scoped, tag = 'internal scratch']
  %s0 = inlined_call_operand.vmem [shape: f32[64,16], index: 0, kind: input, shape index: {}]
  %s1 = inlined_call_operand.vmem [shape: f32[16,128], index: 1, kind: input, shape index: {}]
  %s2 = inlined_call_operand.vmem [shape: f32[1,128], index: 2, kind: input, shape index: {}]
  %s3 = inlined_call_operand.vmem [shape: f32[64,128], index: 3, kind: output, shape index: {}]
  %s4 = sld [smem:[#allocation0]]
  $region45: #{_run.1} parent=0
    _
  %s6 = ssub.s32 1, %s4
  %s7 = scalar_select 0, %s6, %s4
  loop: start=0, step=1, limit=4
  $region2: #{_run.1} parent=0 // loop_pre_header
    _
  $region3: #{_run.1} parent=0 // loop_header
    %s9 = sphi 0, %s13
    %p10 = scmp.ge.s32.totalorder %s9, 4
    %s16 = sphi 0, %s28
    %s17 = sphi 0, %s24
    %s18 = sphi 0, %s16
    %s19 = sphi 0, %s17
    %s20 = sphi 0, %s18
    %s21 = sphi 0, %s19
    %s33 = sphi 0, %s35
    %s36 = sphi 0, %s33
    %s37 = sphi 0, %s36
    %s53 = sphi 0, %s37
    %s59 = sphi 0, %s61
    %s62 = sphi 0, %s59
    %s63 = sphi 0, %s62
    %s79 = sphi 0, %s63
    %s83 = sphi 0, %s83
    %s85 = sphi 0, %s83
    %s86 = sphi 0, %s85
    %s100 = sphi 0, %s86
    %s106 = sphi 0, %s108
    %s109 = sphi 0, %s106
    %s110 = sphi 0, %s109
    %s126 = sphi 0, %s110
  $region4: #{_run.1} parent=0 // loop_header_branch
    %12 = sbr.rel (%p10) target = $region8
  $region5: #{_run.1} parent=0 // loop_body
    %s14 = ssub.s32 %s9, 1
    %s15 = ssub.s32 %s9, 2
    %s22 = sadd.s32 1, %s17
    %p23 = scmp.ge.s32.totalorder %s22, 1
    %s24 = scalar_select %p23, 0, %s22
    %s25 = sadd.s32 1, %s16
    %s26 = scalar_select %p23, %s25, %s16
    %p27 = scmp.ge.s32.totalorder %s26, 2
    %s28 = scalar_select %p27, 0, %s26
    %s29 = ssub.s32 %s16, %s28
    %s30 = ssub.s32 %s17, %s24
    %s31 = sor.u32 %s29, %s30
    %p32 = scmp.eq.s32.totalorder %s31, 0
    %s34 = sadd.s32 %s33, 1
    %s35 = scalar_select %p32, %s33, %s34
    %p38 = pneg %p32
    %p39 = scmp.eq.s32.totalorder %s9, 1
    %p40 = por %p38, %p39
    %p41 = scmp.ne.s32.totalorder %s33, %s36
    %p42 = scmp.eq.s32.totalorder %s9, 0
    %p43 = por %p41, %p42
    %p44 = scmp.ne.s32.totalorder %s33, %s36
    %p45 = scmp.eq.s32.totalorder %s14, 1
    %p46 = por %p44, %p45
    %p47 = scmp.ne.s32.totalorder %s36, %s37
    %p48 = scmp.eq.s32.totalorder %s14, 0
    %p49 = por %p47, %p48
    %p50 = scmp.ne.s32.totalorder %s36, %s37
    %p51 = scmp.eq.s32.totalorder %s15, 1
    %p52 = por %p50, %p51
    %p54 = scmp.ne.s32.totalorder %s37, %s53
    %p55 = scmp.eq.s32.totalorder %s15, 0
    %p56 = por %p54, %p55
    %s57 = ssub.s32 %s17, %s24
    %p58 = scmp.eq.s32.totalorder %s57, 0
    %s60 = sadd.s32 %s59, 1
    %s61 = scalar_select %p58, %s59, %s60
    %p64 = pneg %p58
    %p65 = scmp.eq.s32.totalorder %s9, 1
    %p66 = por %p64, %p65
    %p67 = scmp.ne.s32.totalorder %s59, %s62
    %p68 = scmp.eq.s32.totalorder %s9, 0
    %p69 = por %p67, %p68
    %p70 = scmp.ne.s32.totalorder %s59, %s62
    %p71 = scmp.eq.s32.totalorder %s14, 1
    %p72 = por %p70, %p71
    %p73 = scmp.ne.s32.totalorder %s62, %s63
    %p74 = scmp.eq.s32.totalorder %s14, 0
    %p75 = por %p73, %p74
    %p76 = scmp.ne.s32.totalorder %s62, %s63
    %p77 = scmp.eq.s32.totalorder %s15, 1
    %p78 = por %p76, %p77
    %p80 = scmp.ne.s32.totalorder %s63, %s79
    %p81 = scmp.eq.s32.totalorder %s15, 0
    %p82 = por %p80, %p81
    %s84 = sadd.s32 %s83, 1
    %p87 = scmp.eq.s32.totalorder %s9, 1
    %p88 = scmp.ne.s32.totalorder %s83, %s85
    %p89 = scmp.eq.s32.totalorder %s9, 0
    %p90 = por %p88, %p89
    %p91 = scmp.ne.s32.totalorder %s83, %s85
    %p92 = scmp.eq.s32.totalorder %s14, 1
    %p93 = por %p91, %p92
    %p94 = scmp.ne.s32.totalorder %s85, %s86
    %p95 = scmp.eq.s32.totalorder %s14, 0
    %p96 = por %p94, %p95
    %p97 = scmp.ne.s32.totalorder %s85, %s86
    %p98 = scmp.eq.s32.totalorder %s15, 1
    %p99 = por %p97, %p98
    %p101 = scmp.ne.s32.totalorder %s86, %s100
    %p102 = scmp.eq.s32.totalorder %s15, 0
    %p103 = por %p101, %p102
    %s104 = ssub.s32 %s16, %s28
    %p105 = scmp.eq.s32.totalorder %s104, 0
    %s107 = sadd.s32 %s106, 1
    %s108 = scalar_select %p105, %s106, %s107
    %p111 = pneg %p105
    %p112 = scmp.eq.s32.totalorder %s9, 1
    %p113 = por %p111, %p112
    %p114 = scmp.ne.s32.totalorder %s106, %s109
    %p115 = scmp.eq.s32.totalorder %s9, 0
    %p116 = por %p114, %p115
    %p117 = scmp.ne.s32.totalorder %s106, %s109
    %p118 = scmp.eq.s32.totalorder %s14, 1
    %p119 = por %p117, %p118
    %p120 = scmp.ne.s32.totalorder %s109, %s110
    %p121 = scmp.eq.s32.totalorder %s14, 0
    %p122 = por %p120, %p121
    %p123 = scmp.ne.s32.totalorder %s109, %s110
    %p124 = scmp.eq.s32.totalorder %s15, 1
    %p125 = por %p123, %p124
    %p127 = scmp.ne.s32.totalorder %s110, %s126
    %p128 = scmp.eq.s32.totalorder %s15, 0
    %p129 = por %p127, %p128
    %p130 = scmp.le.s32.totalorder 1, %s9
    %p131 = scmp.lt.s32.totalorder %s9, 3
    %p132 = pnand %p130, %p131
    %p133 = pneg %p132
    // Predicated region
    $region9: #{_run.1} parent=5 // pred_check
      _
    $region10: #{_run.1} parent=5 // pred_check_branch
      %135 = sbr.rel (%p132) target = $region12
    $region11: #{_run.1} parent=5 // pred_region
      %s136 = ssub.s32 %s9, 1
      // Predicated region
      $region13: #{_run.1} parent=11 // pred_check
        %p137 = pneg %p75
      $region14: #{_run.1} parent=11 // pred_check_branch
        %139 = sbr.rel (%p137) target = $region16
      $region15: #{_run.1} parent=11 // pred_region
        %s140 = smul.u32 2, %s19
        %p141 = scmp.lt.s32.totalorder %s140, 1
        %s142 = scalar_select %p141, %s140, 1
        %s143 = smul.addr %s142, 8
        %s144 = scalar_lea.vmem %s1, %s143
        %s145 = smul.u32 2, %s19
      $region16: #{_run.1} parent=11 // pred_fallthru
        _
      // Predicated region
      $region17: #{_run.1} parent=11 // pred_check
        %p146 = pneg %p96
      $region18: #{_run.1} parent=11 // pred_check_branch
        %148 = sbr.rel (%p146) target = $region20
      $region19: #{_run.1} parent=11 // pred_region
        _
      $region20: #{_run.1} parent=11 // pred_fallthru
        _
    $region12: #{_run.1} parent=5 // pred_fallthru
      _
    %p149 = scmp.lt.s32.totalorder %s9, 2
    // Predicated region
    $region21: #{_run.1} parent=5 // pred_check
      %p150 = pneg %p149
    $region22: #{_run.1} parent=5 // pred_check_branch
      %152 = sbr.rel (%p150) target = $region24
    $region23: #{_run.1} parent=5 // pred_region
      // Predicated region
      $region25: #{_run.1} parent=23 // pred_check
        %p153 = pneg %p43
      $region26: #{_run.1} parent=23 // pred_check_branch
        %155 = sbr.rel (%p153) target = $region28
      $region27: #{_run.1} parent=23 // pred_region
        %s156 = smul.u32 4, %s16
        %p157 = scmp.lt.s32.totalorder %s156, 7
        %s158 = scalar_select %p157, %s156, 7
        %p159 = scmp.lt.s32.totalorder %s17, 0
        %s160 = scalar_select %p159, %s17, 0
        %s161 = sadd.s32 %s160, %s158
        %s162 = smul.addr %s161, 8
        %s163 = scalar_lea.vmem %s0, %s162
        %s164 = smul.u32 4, %s16
      $region28: #{_run.1} parent=23 // pred_fallthru
        _
    $region24: #{_run.1} parent=5 // pred_fallthru
      _
    %p165 = scmp.le.s32.totalorder 1, %s9
    %p166 = scmp.lt.s32.totalorder %s9, 3
    %p167 = pnand %p165, %p166
    %p168 = pneg %p167
    // Predicated region
    $region29: #{_run.1} parent=5 // pred_check
      _
    $region30: #{_run.1} parent=5 // pred_check_branch
      %170 = sbr.rel (%p167) target = $region32
    $region31: #{_run.1} parent=5 // pred_region
      %s171 = ssub.s32 %s9, 1
      %s172 = smul.u32 4, %s18
      %p173 = scmp.lt.s32.totalorder %s172, 7
      %s174 = scalar_select %p173, %s172, 7
      %p175 = scmp.lt.s32.totalorder %s19, 0
      %s176 = scalar_select %p175, %s19, 0
      %s177 = sadd.s32 %s176, %s174
      %s178 = smul.addr %s177, 8
      %s179 = scalar_lea.vmem %s0, %s178
      %p180 = pneg %p49
      %p181 = pneg %p46
      %s182 = smul.u32 2, %s19
      %p183 = scmp.lt.s32.totalorder %s182, 1
      %s184 = scalar_select %p183, %s182, 1
      %s185 = smul.addr %s184, 8
      %s186 = scalar_lea.vmem %s1, %s185
      %p187 = pneg %p75
      %p188 = pneg %p72
      %p189 = pneg %p96
      %p190 = pneg %p93
      %p191 = pneg %p122
      %p192 = pneg %p119
      %s193 = smul.u32 4, %s18
      %p194 = scmp.lt.s32.totalorder %s193, 7
      %s195 = scalar_select %p194, %s193, 7
      %s196 = smul.addr %s195, 8
      %s197 = scalar_lea.vmem %s3, %s196
      %s198 = smul.u32 4, %s18
      %p199 = scmp.lt.s32.totalorder %s198, 7
      %s200 = scalar_select %p199, %s198, 7
      %p201 = scmp.lt.s32.totalorder %s19, 0
      %s202 = scalar_select %p201, %s19, 0
      %s203 = sadd.s32 %s202, %s200
      %s204 = smul.addr %s203, 8
      %s205 = scalar_lea.vmem %s0, %s204
      %s206 = smul.u32 4, %s18
      %s207 = smul.u32 2, %s19
      %p208 = scmp.lt.s32.totalorder %s207, 1
      %s209 = scalar_select %p208, %s207, 1
      %s210 = smul.addr %s209, 8
      %s211 = scalar_lea.vmem %s1, %s210
      %s212 = smul.u32 2, %s19
      %s213 = smul.u32 4, %s18
      %p214 = scmp.lt.s32.totalorder %s213, 7
      %s215 = scalar_select %p214, %s213, 7
      %s216 = smul.addr %s215, 8
      %s217 = scalar_lea.vmem %s3, %s216
      %s218 = smul.u32 4, %s18
      %v219 = vld [vmem:[%s205] sm:$0xff]
      %v220 = vld [vmem:[%s205 + $0x8] sm:$0xff]
      %v221 = vld [vmem:[%s205 + $0x10] sm:$0xff]
      %v222 = vld [vmem:[%s205 + $0x18] sm:$0xff]
      %v223 = vld [vmem:[%s211] sm:$0xff]
      %v224 = vld [vmem:[%s211 + $0x8] sm:$0xff]
      %vm225 = vcmask 130048
      %v227 = vsel %vm225, %v219, 0
      %v230 = vsel %vm225, %v220, 0
      %v233 = vsel %vm225, %v221, 0
      %v236 = vsel %vm225, %v222, 0
      %238 = vmatpush.msra.mxu0 0.0
      %239 = vmatpush.msra.mxu0 0.0
      %240 = vmatpush.msra.mxu0 0.0
      %241 = vmatpush.msra.mxu0 0.0
      %242 = vmatpush.msra.mxu0 0.0
      %243 = vmatpush.msra.mxu0 0.0
      %244 = vmatpush.msra.mxu0 0.0
      %245 = vmatpush.msra.mxu0 0.0
      %246 = vmatpush.msra.mxu0 0.0
      %247 = vmatpush.msra.mxu0 0.0
      %248 = vmatpush.msra.mxu0 0.0
      %249 = vmatpush.msra.mxu0 0.0
      %250 = vmatpush.msra.mxu0 0.0
      %251 = vmatpush.msra.mxu0 0.0
      %252 = vmatpush.msra.mxu0 %v224
      %253 = vmatpush.msra.mxu0 %v223
      %254 = vmatmul.f32.gmra.mxu0 %v227
      %v255 = vpop.f32.mrf.mxu0
      %v256 = vadd.f32 0.0, %v255
      %257 = vmatmul.f32.gmra.mxu0 %v230
      %v258 = vpop.f32.mrf.mxu0
      %v259 = vadd.f32 0.0, %v258
      %260 = vmatmul.f32.gmra.mxu0 %v233
      %v261 = vpop.f32.mrf.mxu0
      %v262 = vadd.f32 0.0, %v261
      %263 = vmatmul.f32.gmra.mxu0 %v236
      %v264 = vpop.f32.mrf.mxu0
      %v265 = vadd.f32 0.0, %v264
      %266 = vdwg.mxu0
      %v267 = vmul.f32 %v219, %v219
      %v268 = vmul.f32 %v220, %v220
      %v269 = vmul.f32 %v221, %v221
      %v270 = vmul.f32 %v222, %v222
      %v271 = vsel %vm225, %v267, 0.0
      %272 = vadd.xlane.f32.xlu0 %v271
      %v273 = vpop.xlane.xlu0 %272
      %v274 = vsel %vm225, %v268, 0.0
      %275 = vadd.xlane.f32.xlu0 %v274
      %v276 = vpop.xlane.xlu0 %275
      %v277 = vsel %vm225, %v269, 0.0
      %278 = vadd.xlane.f32.xlu0 %v277
      %v279 = vpop.xlane.xlu0 %278
      %v280 = vsel %vm225, %v270, 0.0
      %281 = vadd.xlane.f32.xlu0 %v280
      %v282 = vpop.xlane.xlu0 %281
      %v283 = vrsqrt.pop %v273
      %v284 = vmul.f32 %v283, %v273
      %v285 = vmul.f32 %v284, %v283
      %v286 = vmul.f32 0.5, %v285
      %v287 = vsub.f32 1.5, %v286
      %v288 = vmul.f32 %v283, %v287
      %v289 = vmul.f32 %v273, %v288
      %vm290 = vcmp.eq.f32.partialorder %v273, inf
      %v291 = vsel %vm290, %v273, %v289
      %vm292 = vcmp.eq.f32.partialorder %v273, 0.0
      %v293 = vand.u32 %v273, 2147483648
      %v294 = vsel %vm292, %v293, %v291
      %v295 = vrsqrt.pop %v276
      %v296 = vmul.f32 %v295, %v276
      %v297 = vmul.f32 %v296, %v295
      %v298 = vmul.f32 0.5, %v297
      %v299 = vsub.f32 1.5, %v298
      %v300 = vmul.f32 %v295, %v299
      %v301 = vmul.f32 %v276, %v300
      %vm302 = vcmp.eq.f32.partialorder %v276, inf
      %v303 = vsel %vm302, %v276, %v301
      %vm304 = vcmp.eq.f32.partialorder %v276, 0.0
      %v305 = vand.u32 %v276, 2147483648
      %v306 = vsel %vm304, %v305, %v303
      %v307 = vrsqrt.pop %v279
      %v308 = vmul.f32 %v307, %v279
      %v309 = vmul.f32 %v308, %v307
      %v310 = vmul.f32 0.5, %v309
      %v311 = vsub.f32 1.5, %v310
      %v312 = vmul.f32 %v307, %v311
      %v313 = vmul.f32 %v279, %v312
      %vm314 = vcmp.eq.f32.partialorder %v279, inf
      %v315 = vsel %vm314, %v279, %v313
      %vm316 = vcmp.eq.f32.partialorder %v279, 0.0
      %v317 = vand.u32 %v279, 2147483648
      %v318 = vsel %vm316, %v317, %v315
      %v319 = vrsqrt.pop %v282
      %v320 = vmul.f32 %v319, %v282
      %v321 = vmul.f32 %v320, %v319
      %v322 = vmul.f32 0.5, %v321
      %v323 = vsub.f32 1.5, %v322
      %v324 = vmul.f32 %v319, %v323
      %v325 = vmul.f32 %v282, %v324
      %vm326 = vcmp.eq.f32.partialorder %v282, inf
      %v327 = vsel %vm326, %v282, %v325
      %vm328 = vcmp.eq.f32.partialorder %v282, 0.0
      %v329 = vand.u32 %v282, 2147483648
      %v330 = vsel %vm328, %v329, %v327
      %v331 = vmax.f32 %v294, 1e-15
      %v332 = vmax.f32 %v306, 1e-15
      %v333 = vmax.f32 %v318, 1e-15
      %v334 = vmax.f32 %v330, 1e-15
      %v335 = vmul.f32 %v256, %v256
      %v336 = vmul.f32 %v259, %v259
      %v337 = vmul.f32 %v262, %v262
      %v338 = vmul.f32 %v265, %v265
      %339 = vadd.xlane.f32.xlu0 %v335
      %v340 = vpop.xlane.xlu0 %339
      %341 = vadd.xlane.f32.xlu0 %v336
      %v342 = vpop.xlane.xlu0 %341
      %343 = vadd.xlane.f32.xlu0 %v337
      %v344 = vpop.xlane.xlu0 %343
      %345 = vadd.xlane.f32.xlu0 %v338
      %v346 = vpop.xlane.xlu0 %345
      %v347 = vrsqrt.pop %v340
      %v348 = vmul.f32 %v347, %v340
      %v349 = vmul.f32 %v348, %v347
      %v350 = vmul.f32 0.5, %v349
      %v351 = vsub.f32 1.5, %v350
      %v352 = vmul.f32 %v347, %v351
      %v353 = vmul.f32 %v340, %v352
      %vm354 = vcmp.eq.f32.partialorder %v340, inf
      %v355 = vsel %vm354, %v340, %v353
      %vm356 = vcmp.eq.f32.partialorder %v340, 0.0
      %v357 = vand.u32 %v340, 2147483648
      %v358 = vsel %vm356, %v357, %v355
      %v359 = vrsqrt.pop %v342
      %v360 = vmul.f32 %v359, %v342
      %v361 = vmul.f32 %v360, %v359
      %v362 = vmul.f32 0.5, %v361
      %v363 = vsub.f32 1.5, %v362
      %v364 = vmul.f32 %v359, %v363
      %v365 = vmul.f32 %v342, %v364
      %vm366 = vcmp.eq.f32.partialorder %v342, inf
      %v367 = vsel %vm366, %v342, %v365
      %vm368 = vcmp.eq.f32.partialorder %v342, 0.0
      %v369 = vand.u32 %v342, 2147483648
      %v370 = vsel %vm368, %v369, %v367
      %v371 = vrsqrt.pop %v344
      %v372 = vmul.f32 %v371, %v344
      %v373 = vmul.f32 %v372, %v371
      %v374 = vmul.f32 0.5, %v373
      %v375 = vsub.f32 1.5, %v374
      %v376 = vmul.f32 %v371, %v375
      %v377 = vmul.f32 %v344, %v376
      %vm378 = vcmp.eq.f32.partialorder %v344, inf
      %v379 = vsel %vm378, %v344, %v377
      %vm380 = vcmp.eq.f32.partialorder %v344, 0.0
      %v381 = vand.u32 %v344, 2147483648
      %v382 = vsel %vm380, %v381, %v379
      %v383 = vrsqrt.pop %v346
      %v384 = vmul.f32 %v383, %v346
      %v385 = vmul.f32 %v384, %v383
      %v386 = vmul.f32 0.5, %v385
      %v387 = vsub.f32 1.5, %v386
      %v388 = vmul.f32 %v383, %v387
      %v389 = vmul.f32 %v346, %v388
      %vm390 = vcmp.eq.f32.partialorder %v346, inf
      %v391 = vsel %vm390, %v346, %v389
      %vm392 = vcmp.eq.f32.partialorder %v346, 0.0
      %v393 = vand.u32 %v346, 2147483648
      %v394 = vsel %vm392, %v393, %v391
      %v395 = vmax.f32 %v358, 1e-15
      %v396 = vmax.f32 %v370, 1e-15
      %v397 = vmax.f32 %v382, 1e-15
      %v398 = vmax.f32 %v394, 1e-15
      %v399 = vrcp.pop %v331
      %v400 = vmul.f32 %v331, %v399
      %v401 = vsub.f32 1.0, %v400
      %v402 = vmul.f32 %v399, %v401
      %v403 = vadd.f32 %v399, %v402
      %vm404 = vweird.f32 %v331
      %vm405 = vweird.f32 %v399
      %vm406 = vmor %vm404, %vm405
      %v407 = vsel %vm406, %v399, %v403
      %v408 = vand.u32 2147483647, %v331
      %vm409 = vcmp.eq.f32.partialorder %v408, 8.507059e+37
      %v410 = vand.u32 %v331, 2147483648
      %v411 = vor.u32 1.1754944e-38, %v410
      %v412 = vsel %vm409, %v411, %v407
      %v413 = vrcp.pop %v332
      %v414 = vmul.f32 %v332, %v413
      %v415 = vsub.f32 1.0, %v414
      %v416 = vmul.f32 %v413, %v415
      %v417 = vadd.f32 %v413, %v416
      %vm418 = vweird.f32 %v332
      %vm419 = vweird.f32 %v413
      %vm420 = vmor %vm418, %vm419
      %v421 = vsel %vm420, %v413, %v417
      %v422 = vand.u32 2147483647, %v332
      %vm423 = vcmp.eq.f32.partialorder %v422, 8.507059e+37
      %v424 = vand.u32 %v332, 2147483648
      %v425 = vor.u32 1.1754944e-38, %v424
      %v426 = vsel %vm423, %v425, %v421
      %v427 = vrcp.pop %v333
      %v428 = vmul.f32 %v333, %v427
      %v429 = vsub.f32 1.0, %v428
      %v430 = vmul.f32 %v427, %v429
      %v431 = vadd.f32 %v427, %v430
      %vm432 = vweird.f32 %v333
      %vm433 = vweird.f32 %v427
      %vm434 = vmor %vm432, %vm433
      %v435 = vsel %vm434, %v427, %v431
      %v436 = vand.u32 2147483647, %v333
      %vm437 = vcmp.eq.f32.partialorder %v436, 8.507059e+37
      %v438 = vand.u32 %v333, 2147483648
      %v439 = vor.u32 1.1754944e-38, %v438
      %v440 = vsel %vm437, %v439, %v435
      %v441 = vrcp.pop %v334
      %v442 = vmul.f32 %v334, %v441
      %v443 = vsub.f32 1.0, %v442
      %v444 = vmul.f32 %v441, %v443
      %v445 = vadd.f32 %v441, %v444
      %vm446 = vweird.f32 %v334
      %vm447 = vweird.f32 %v441
      %vm448 = vmor %vm446, %vm447
      %v449 = vsel %vm448, %v441, %v445
      %v450 = vand.u32 2147483647, %v334
      %vm451 = vcmp.eq.f32.partialorder %v450, 8.507059e+37
      %v452 = vand.u32 %v334, 2147483648
      %v453 = vor.u32 1.1754944e-38, %v452
      %v454 = vsel %vm451, %v453, %v449
      %v455 = vmul.f32 %v395, %v412
      %v456 = vmul.f32 %v396, %v426
      %v457 = vmul.f32 %v397, %v440
      %v458 = vmul.f32 %v398, %v454
      %v459 = vmax.f32 %v331, -0.9999999
      %v460 = vmax.f32 %v332, -0.9999999
      %v461 = vmax.f32 %v333, -0.9999999
      %v462 = vmax.f32 %v334, -0.9999999
      %v463 = vmin.f32 %v459, 0.9999999
      %v464 = vmin.f32 %v460, 0.9999999
      %v465 = vmin.f32 %v461, 0.9999999
      %v466 = vmin.f32 %v462, 0.9999999
      %v467 = vadd.f32 %v463, 1.0
      %v468 = vlog2.pop %v467
      %v469 = vmul.f32 %v468, 0.6931472
      %v470 = vmul.f32 -0.5, %v463
      %v471 = vadd.f32 %v470, 1.0
      %v472 = vmul.f32 %v471, %v463
      %v473 = vand.u32 2147483647, %v463
      %vm474 = vcmp.lt.f32.partialorder %v473, 0.0004427343
      %v475 = vsel %vm474, %v472, %v469
      %v476 = vadd.f32 %v464, 1.0
      %v477 = vlog2.pop %v476
      %v478 = vmul.f32 %v477, 0.6931472
      %v479 = vmul.f32 -0.5, %v464
      %v480 = vadd.f32 %v479, 1.0
      %v481 = vmul.f32 %v480, %v464
      %v482 = vand.u32 2147483647, %v464
      %vm483 = vcmp.lt.f32.partialorder %v482, 0.0004427343
      %v484 = vsel %vm483, %v481, %v478
      %v485 = vadd.f32 %v465, 1.0
      %v486 = vlog2.pop %v485
      %v487 = vmul.f32 %v486, 0.6931472
      %v488 = vmul.f32 -0.5, %v465
      %v489 = vadd.f32 %v488, 1.0
      %v490 = vmul.f32 %v489, %v465
      %v491 = vand.u32 2147483647, %v465
      %vm492 = vcmp.lt.f32.partialorder %v491, 0.0004427343
      %v493 = vsel %vm492, %v490, %v487
      %v494 = vadd.f32 %v466, 1.0
      %v495 = vlog2.pop %v494
      %v496 = vmul.f32 %v495, 0.6931472
      %v497 = vmul.f32 -0.5, %v466
      %v498 = vadd.f32 %v497, 1.0
      %v499 = vmul.f32 %v498, %v466
      %v500 = vand.u32 2147483647, %v466
      %vm501 = vcmp.lt.f32.partialorder %v500, 0.0004427343
      %v502 = vsel %vm501, %v499, %v496
      %v503 = vsub.f32 0.0, %v463
      %v504 = vsub.f32 0.0, %v464
      %v505 = vsub.f32 0.0, %v465
      %v506 = vsub.f32 0.0, %v466
      %v507 = vadd.f32 %v503, 1.0
      %v508 = vlog2.pop %v507
      %v509 = vmul.f32 %v508, 0.6931472
      %v510 = vmul.f32 -0.5, %v503
      %v511 = vadd.f32 %v510, 1.0
      %v512 = vmul.f32 %v511, %v503
      %v513 = vand.u32 2147483647, %v503
      %vm514 = vcmp.lt.f32.partialorder %v513, 0.0004427343
      %v515 = vsel %vm514, %v512, %v509
      %v516 = vadd.f32 %v504, 1.0
      %v517 = vlog2.pop %v516
      %v518 = vmul.f32 %v517, 0.6931472
      %v519 = vmul.f32 -0.5, %v504
      %v520 = vadd.f32 %v519, 1.0
      %v521 = vmul.f32 %v520, %v504
      %v522 = vand.u32 2147483647, %v504
      %vm523 = vcmp.lt.f32.partialorder %v522, 0.0004427343
      %v524 = vsel %vm523, %v521, %v518
      %v525 = vadd.f32 %v505, 1.0
      %v526 = vlog2.pop %v525
      %v527 = vmul.f32 %v526, 0.6931472
      %v528 = vmul.f32 -0.5, %v505
      %v529 = vadd.f32 %v528, 1.0
      %v530 = vmul.f32 %v529, %v505
      %v531 = vand.u32 2147483647, %v505
      %vm532 = vcmp.lt.f32.partialorder %v531, 0.0004427343
      %v533 = vsel %vm532, %v530, %v527
      %v534 = vadd.f32 %v506, 1.0
      %v535 = vlog2.pop %v534
      %v536 = vmul.f32 %v535, 0.6931472
      %v537 = vmul.f32 -0.5, %v506
      %v538 = vadd.f32 %v537, 1.0
      %v539 = vmul.f32 %v538, %v506
      %v540 = vand.u32 2147483647, %v506
      %vm541 = vcmp.lt.f32.partialorder %v540, 0.0004427343
      %v542 = vsel %vm541, %v539, %v536
      %v543 = vsub.f32 %v475, %v515
      %v544 = vsub.f32 %v484, %v524
      %v545 = vsub.f32 %v493, %v533
      %v546 = vsub.f32 %v502, %v542
      %v547 = vmul.f32 %v543, 0.5
      %v548 = vmul.f32 %v544, 0.5
      %v549 = vmul.f32 %v545, 0.5
      %v550 = vmul.f32 %v546, 0.5
      %v551 = vmul.f32 %v455, %v547
      %v552 = vmul.f32 %v456, %v548
      %v553 = vmul.f32 %v457, %v549
      %v554 = vmul.f32 %v458, %v550
      %v555 = vmax.f32 %v551, -15.0
      %v556 = vmax.f32 %v552, -15.0
      %v557 = vmax.f32 %v553, -15.0
      %v558 = vmax.f32 %v554, -15.0
      %v559 = vmin.f32 %v555, 15.0
      %v560 = vmin.f32 %v556, 15.0
      %v561 = vmin.f32 %v557, 15.0
      %v562 = vmin.f32 %v558, 15.0
      %v563 = vtanh.pop %v559
      %v564 = vtanh.pop %v560
      %v565 = vtanh.pop %v561
      %v566 = vtanh.pop %v562
      %v567 = vrcp.pop %v395
      %v568 = vmul.f32 %v395, %v567
      %v569 = vsub.f32 1.0, %v568
      %v570 = vmul.f32 %v567, %v569
      %v571 = vadd.f32 %v567, %v570
      %vm572 = vweird.f32 %v395
      %vm573 = vweird.f32 %v567
      %vm574 = vmor %vm572, %vm573
      %v575 = vsel %vm574, %v567, %v571
      %v576 = vand.u32 2147483647, %v395
      %vm577 = vcmp.eq.f32.partialorder %v576, 8.507059e+37
      %v578 = vand.u32 %v395, 2147483648
      %v579 = vor.u32 1.1754944e-38, %v578
      %v580 = vsel %vm577, %v579, %v575
      %v581 = vrcp.pop %v396
      %v582 = vmul.f32 %v396, %v581
      %v583 = vsub.f32 1.0, %v582
      %v584 = vmul.f32 %v581, %v583
      %v585 = vadd.f32 %v581, %v584
      %vm586 = vweird.f32 %v396
      %vm587 = vweird.f32 %v581
      %vm588 = vmor %vm586, %vm587
      %v589 = vsel %vm588, %v581, %v585
      %v590 = vand.u32 2147483647, %v396
      %vm591 = vcmp.eq.f32.partialorder %v590, 8.507059e+37
      %v592 = vand.u32 %v396, 2147483648
      %v593 = vor.u32 1.1754944e-38, %v592
      %v594 = vsel %vm591, %v593, %v589
      %v595 = vrcp.pop %v397
      %v596 = vmul.f32 %v397, %v595
      %v597 = vsub.f32 1.0, %v596
      %v598 = vmul.f32 %v595, %v597
      %v599 = vadd.f32 %v595, %v598
      %vm600 = vweird.f32 %v397
      %vm601 = vweird.f32 %v595
      %vm602 = vmor %vm600, %vm601
      %v603 = vsel %vm602, %v595, %v599
      %v604 = vand.u32 2147483647, %v397
      %vm605 = vcmp.eq.f32.partialorder %v604, 8.507059e+37
      %v606 = vand.u32 %v397, 2147483648
      %v607 = vor.u32 1.1754944e-38, %v606
      %v608 = vsel %vm605, %v607, %v603
      %v609 = vrcp.pop %v398
      %v610 = vmul.f32 %v398, %v609
      %v611 = vsub.f32 1.0, %v610
      %v612 = vmul.f32 %v609, %v611
      %v613 = vadd.f32 %v609, %v612
      %vm614 = vweird.f32 %v398
      %vm615 = vweird.f32 %v609
      %vm616 = vmor %vm614, %vm615
      %v617 = vsel %vm616, %v609, %v613
      %v618 = vand.u32 2147483647, %v398
      %vm619 = vcmp.eq.f32.partialorder %v618, 8.507059e+37
      %v620 = vand.u32 %v398, 2147483648
      %v621 = vor.u32 1.1754944e-38, %v620
      %v622 = vsel %vm619, %v621, %v617
      %v623 = vmul.f32 %v563, %v580
      %v624 = vmul.f32 %v564, %v594
      %v625 = vmul.f32 %v565, %v608
      %v626 = vmul.f32 %v566, %v622
      %vm627 = vcmp.eq.f32.partialorder %v340, 0.0
      %vm628 = vcmp.eq.f32.partialorder %v342, 0.0
      %vm629 = vcmp.eq.f32.partialorder %v344, 0.0
      %vm630 = vcmp.eq.f32.partialorder %v346, 0.0
      %v631 = vsel %vm627, 0.0, %v623
      %v632 = vsel %vm628, 0.0, %v624
      %v633 = vsel %vm629, 0.0, %v625
      %v634 = vsel %vm630, 0.0, %v626
      %v635 = vand.u32 2147483647, %v631
      %v636 = vand.u32 2147483647, %v632
      %v637 = vand.u32 2147483647, %v633
      %v638 = vand.u32 2147483647, %v634
      %v639 = vmul.f32 %v635, %v395
      %v640 = vmul.f32 %v636, %v396
      %v641 = vmul.f32 %v637, %v397
      %v642 = vmul.f32 %v638, %v398
      %v643 = vmax.f32 %v639, 1e-15
      %v644 = vmax.f32 %v640, 1e-15
      %v645 = vmax.f32 %v641, 1e-15
      %v646 = vmax.f32 %v642, 1e-15
      %vm647 = vcmp.gt.f32.partialorder %v643, 0.996
      %vm648 = vcmp.gt.f32.partialorder %v644, 0.996
      %vm649 = vcmp.gt.f32.partialorder %v645, 0.996
      %vm650 = vcmp.gt.f32.partialorder %v646, 0.996
      %v651 = vrcp.pop %v643
      %v652 = vmul.f32 %v643, %v651
      %v653 = vsub.f32 1.0, %v652
      %v654 = vmul.f32 %v651, %v653
      %v655 = vadd.f32 %v651, %v654
      %vm656 = vweird.f32 %v643
      %vm657 = vweird.f32 %v651
      %vm658 = vmor %vm656, %vm657
      %v659 = vsel %vm658, %v651, %v655
      %v660 = vand.u32 2147483647, %v643
      %vm661 = vcmp.eq.f32.partialorder %v660, 8.507059e+37
      %v662 = vand.u32 %v643, 2147483648
      %v663 = vor.u32 1.1754944e-38, %v662
      %v664 = vsel %vm661, %v663, %v659
      %v665 = vrcp.pop %v644
      %v666 = vmul.f32 %v644, %v665
      %v667 = vsub.f32 1.0, %v666
      %v668 = vmul.f32 %v665, %v667
      %v669 = vadd.f32 %v665, %v668
      %vm670 = vweird.f32 %v644
      %vm671 = vweird.f32 %v665
      %vm672 = vmor %vm670, %vm671
      %v673 = vsel %vm672, %v665, %v669
      %v674 = vand.u32 2147483647, %v644
      %vm675 = vcmp.eq.f32.partialorder %v674, 8.507059e+37
      %v676 = vand.u32 %v644, 2147483648
      %v677 = vor.u32 1.1754944e-38, %v676
      %v678 = vsel %vm675, %v677, %v673
      %v679 = vrcp.pop %v645
      %v680 = vmul.f32 %v645, %v679
      %v681 = vsub.f32 1.0, %v680
      %v682 = vmul.f32 %v679, %v681
      %v683 = vadd.f32 %v679, %v682
      %vm684 = vweird.f32 %v645
      %vm685 = vweird.f32 %v679
      %vm686 = vmor %vm684, %vm685
      %v687 = vsel %vm686, %v679, %v683
      %v688 = vand.u32 2147483647, %v645
      %vm689 = vcmp.eq.f32.partialorder %v688, 8.507059e+37
      %v690 = vand.u32 %v645, 2147483648
      %v691 = vor.u32 1.1754944e-38, %v690
      %v692 = vsel %vm689, %v691, %v687
      %v693 = vrcp.pop %v646
      %v694 = vmul.f32 %v646, %v693
      %v695 = vsub.f32 1.0, %v694
      %v696 = vmul.f32 %v693, %v695
      %v697 = vadd.f32 %v693, %v696
      %vm698 = vweird.f32 %v646
      %vm699 = vweird.f32 %v693
      %vm700 = vmor %vm698, %vm699
      %v701 = vsel %vm700, %v693, %v697
      %v702 = vand.u32 2147483647, %v646
      %vm703 = vcmp.eq.f32.partialorder %v702, 8.507059e+37
      %v704 = vand.u32 %v646, 2147483648
      %v705 = vor.u32 1.1754944e-38, %v704
      %v706 = vsel %vm703, %v705, %v701
      %v707 = vmul.f32 %v664, 0.996
      %v708 = vmul.f32 %v678, 0.996
      %v709 = vmul.f32 %v692, 0.996
      %v710 = vmul.f32 %v706, 0.996
      %v711 = vsel %vm647, %v707, 1.0
      %v712 = vsel %vm648, %v708, 1.0
      %v713 = vsel %vm649, %v709, 1.0
      %v714 = vsel %vm650, %v710, 1.0
      %v715 = vmul.f32 %v631, %v711
      %v716 = vmul.f32 %v632, %v712
      %v717 = vmul.f32 %v633, %v713
      %v718 = vmul.f32 %v634, %v714
      %v719 = vmul.f32 %v715, %v256
      %v720 = vmul.f32 %v716, %v259
      %v721 = vmul.f32 %v717, %v262
      %v722 = vmul.f32 %v718, %v265
      %v723 = vld [vmem:[%s2] sm:$0x1]
      %v724 = vmul.f32 %v715, %v715
      %v725 = vmul.f32 %v716, %v716
      %v726 = vmul.f32 %v717, %v717
      %v727 = vmul.f32 %v718, %v718
      %v728 = vmul.f32 %v724, %v340
      %v729 = vmul.f32 %v725, %v342
      %v730 = vmul.f32 %v726, %v344
      %v731 = vmul.f32 %v727, %v346
      %v732 = vmul.f32 %v723, %v723
      %vm733 = vcmask 1040384
      %v734 = vsel %vm733, %v732, 0.0
      %735 = vadd.xlane.f32.xlu0 %v734
      %v736 = vpop.xlane.xlu0 %735
      %v738 = vperm.slane %v723, 0
      %v740 = vmul.f32 %v719, %v738
      %v741 = vmul.f32 %v720, %v738
      %v742 = vmul.f32 %v721, %v738
      %v743 = vmul.f32 %v722, %v738
      %744 = vadd.xlane.f32.xlu0 %v740
      %v745 = vpop.xlane.xlu0 %744
      %746 = vadd.xlane.f32.xlu0 %v741
      %v747 = vpop.xlane.xlu0 %746
      %748 = vadd.xlane.f32.xlu0 %v742
      %v749 = vpop.xlane.xlu0 %748
      %750 = vadd.xlane.f32.xlu0 %v743
      %v751 = vpop.xlane.xlu0 %750
      %v752 = vmul.f32 %v745, 2.0
      %v753 = vmul.f32 %v747, 2.0
      %v754 = vmul.f32 %v749, 2.0
      %v755 = vmul.f32 %v751, 2.0
      %v756 = vadd.f32 %v752, 1.0
      %v757 = vadd.f32 %v753, 1.0
      %v758 = vadd.f32 %v754, 1.0
      %v759 = vadd.f32 %v755, 1.0
      %v760 = vperm.slane %v736, 0
      %v761 = vadd.f32 %v756, %v760
      %v762 = vadd.f32 %v757, %v760
      %v763 = vadd.f32 %v758, %v760
      %v764 = vadd.f32 %v759, %v760
      %v765 = vmul.f32 %v761, %v719
      %v766 = vmul.f32 %v762, %v720
      %v767 = vmul.f32 %v763, %v721
      %v768 = vmul.f32 %v764, %v722
      %v769 = vsub.f32 1.0, %v728
      %v770 = vsub.f32 1.0, %v729
      %v771 = vsub.f32 1.0, %v730
      %v772 = vsub.f32 1.0, %v731
      %v773 = vmul.f32 %v769, %v738
      %v774 = vmul.f32 %v770, %v738
      %v775 = vmul.f32 %v771, %v738
      %v776 = vmul.f32 %v772, %v738
      %v777 = vadd.f32 %v765, %v773
      %v778 = vadd.f32 %v766, %v774
      %v779 = vadd.f32 %v767, %v775
      %v780 = vadd.f32 %v768, %v776
      %v781 = vmul.f32 %v728, %v760
      %v782 = vmul.f32 %v729, %v760
      %v783 = vmul.f32 %v730, %v760
      %v784 = vmul.f32 %v731, %v760
      %v785 = vadd.f32 %v756, %v781
      %v786 = vadd.f32 %v757, %v782
      %v787 = vadd.f32 %v758, %v783
      %v788 = vadd.f32 %v759, %v784
      %v789 = vmax.f32 %v785, 1e-15
      %v790 = vmax.f32 %v786, 1e-15
      %v791 = vmax.f32 %v787, 1e-15
      %v792 = vmax.f32 %v788, 1e-15
      %v793 = vrcp.pop %v789
      %v794 = vmul.f32 %v789, %v793
      %v795 = vsub.f32 1.0, %v794
      %v796 = vmul.f32 %v793, %v795
      %v797 = vadd.f32 %v793, %v796
      %vm798 = vweird.f32 %v789
      %vm799 = vweird.f32 %v793
      %vm800 = vmor %vm798, %vm799
      %v801 = vsel %vm800, %v793, %v797
      %v802 = vand.u32 2147483647, %v789
      %vm803 = vcmp.eq.f32.partialorder %v802, 8.507059e+37
      %v804 = vand.u32 %v789, 2147483648
      %v805 = vor.u32 1.1754944e-38, %v804
      %v806 = vsel %vm803, %v805, %v801
      %v807 = vrcp.pop %v790
      %v808 = vmul.f32 %v790, %v807
      %v809 = vsub.f32 1.0, %v808
      %v810 = vmul.f32 %v807, %v809
      %v811 = vadd.f32 %v807, %v810
      %vm812 = vweird.f32 %v790
      %vm813 = vweird.f32 %v807
      %vm814 = vmor %vm812, %vm813
      %v815 = vsel %vm814, %v807, %v811
      %v816 = vand.u32 2147483647, %v790
      %vm817 = vcmp.eq.f32.partialorder %v816, 8.507059e+37
      %v818 = vand.u32 %v790, 2147483648
      %v819 = vor.u32 1.1754944e-38, %v818
      %v820 = vsel %vm817, %v819, %v815
      %v821 = vrcp.pop %v791
      %v822 = vmul.f32 %v791, %v821
      %v823 = vsub.f32 1.0, %v822
      %v824 = vmul.f32 %v821, %v823
      %v825 = vadd.f32 %v821, %v824
      %vm826 = vweird.f32 %v791
      %vm827 = vweird.f32 %v821
      %vm828 = vmor %vm826, %vm827
      %v829 = vsel %vm828, %v821, %v825
      %v830 = vand.u32 2147483647, %v791
      %vm831 = vcmp.eq.f32.partialorder %v830, 8.507059e+37
      %v832 = vand.u32 %v791, 2147483648
      %v833 = vor.u32 1.1754944e-38, %v832
      %v834 = vsel %vm831, %v833, %v829
      %v835 = vrcp.pop %v792
      %v836 = vmul.f32 %v792, %v835
      %v837 = vsub.f32 1.0, %v836
      %v838 = vmul.f32 %v835, %v837
      %v839 = vadd.f32 %v835, %v838
      %vm840 = vweird.f32 %v792
      %vm841 = vweird.f32 %v835
      %vm842 = vmor %vm840, %vm841
      %v843 = vsel %vm842, %v835, %v839
      %v844 = vand.u32 2147483647, %v792
      %vm845 = vcmp.eq.f32.partialorder %v844, 8.507059e+37
      %v846 = vand.u32 %v792, 2147483648
      %v847 = vor.u32 1.1754944e-38, %v846
      %v848 = vsel %vm845, %v847, %v843
      %v849 = vmul.f32 %v777, %v806
      %v850 = vmul.f32 %v778, %v820
      %v851 = vmul.f32 %v779, %v834
      %v852 = vmul.f32 %v780, %v848
      %v853 = vmul.f32 %v849, %v849
      %v854 = vmul.f32 %v850, %v850
      %v855 = vmul.f32 %v851, %v851
      %v856 = vmul.f32 %v852, %v852
      %857 = vadd.xlane.f32.xlu0 %v853
      %v858 = vpop.xlane.xlu0 %857
      %859 = vadd.xlane.f32.xlu0 %v854
      %v860 = vpop.xlane.xlu0 %859
      %861 = vadd.xlane.f32.xlu0 %v855
      %v862 = vpop.xlane.xlu0 %861
      %863 = vadd.xlane.f32.xlu0 %v856
      %v864 = vpop.xlane.xlu0 %863
      %v865 = vrsqrt.pop %v858
      %v866 = vmul.f32 %v865, %v858
      %v867 = vmul.f32 %v866, %v865
      %v868 = vmul.f32 0.5, %v867
      %v869 = vsub.f32 1.5, %v868
      %v870 = vmul.f32 %v865, %v869
      %v871 = vmul.f32 %v858, %v870
      %vm872 = vcmp.eq.f32.partialorder %v858, inf
      %v873 = vsel %vm872, %v858, %v871
      %vm874 = vcmp.eq.f32.partialorder %v858, 0.0
      %v875 = vand.u32 %v858, 2147483648
      %v876 = vsel %vm874, %v875, %v873
      %v877 = vrsqrt.pop %v860
      %v878 = vmul.f32 %v877, %v860
      %v879 = vmul.f32 %v878, %v877
      %v880 = vmul.f32 0.5, %v879
      %v881 = vsub.f32 1.5, %v880
      %v882 = vmul.f32 %v877, %v881
      %v883 = vmul.f32 %v860, %v882
      %vm884 = vcmp.eq.f32.partialorder %v860, inf
      %v885 = vsel %vm884, %v860, %v883
      %vm886 = vcmp.eq.f32.partialorder %v860, 0.0
      %v887 = vand.u32 %v860, 2147483648
      %v888 = vsel %vm886, %v887, %v885
      %v889 = vrsqrt.pop %v862
      %v890 = vmul.f32 %v889, %v862
      %v891 = vmul.f32 %v890, %v889
      %v892 = vmul.f32 0.5, %v891
      %v893 = vsub.f32 1.5, %v892
      %v894 = vmul.f32 %v889, %v893
      %v895 = vmul.f32 %v862, %v894
      %vm896 = vcmp.eq.f32.partialorder %v862, inf
      %v897 = vsel %vm896, %v862, %v895
      %vm898 = vcmp.eq.f32.partialorder %v862, 0.0
      %v899 = vand.u32 %v862, 2147483648
      %v900 = vsel %vm898, %v899, %v897
      %v901 = vrsqrt.pop %v864
      %v902 = vmul.f32 %v901, %v864
      %v903 = vmul.f32 %v902, %v901
      %v904 = vmul.f32 0.5, %v903
      %v905 = vsub.f32 1.5, %v904
      %v906 = vmul.f32 %v901, %v905
      %v907 = vmul.f32 %v864, %v906
      %vm908 = vcmp.eq.f32.partialorder %v864, inf
      %v909 = vsel %vm908, %v864, %v907
      %vm910 = vcmp.eq.f32.partialorder %v864, 0.0
      %v911 = vand.u32 %v864, 2147483648
      %v912 = vsel %vm910, %v911, %v909
      %v913 = vmax.f32 %v876, 1e-15
      %v914 = vmax.f32 %v888, 1e-15
      %v915 = vmax.f32 %v900, 1e-15
      %v916 = vmax.f32 %v912, 1e-15
      %vm917 = vcmp.gt.f32.partialorder %v913, 0.996
      %vm918 = vcmp.gt.f32.partialorder %v914, 0.996
      %vm919 = vcmp.gt.f32.partialorder %v915, 0.996
      %vm920 = vcmp.gt.f32.partialorder %v916, 0.996
      %v921 = vrcp.pop %v913
      %v922 = vmul.f32 %v913, %v921
      %v923 = vsub.f32 1.0, %v922
      %v924 = vmul.f32 %v921, %v923
      %v925 = vadd.f32 %v921, %v924
      %vm926 = vweird.f32 %v913
      %vm927 = vweird.f32 %v921
      %vm928 = vmor %vm926, %vm927
      %v929 = vsel %vm928, %v921, %v925
      %v930 = vand.u32 2147483647, %v913
      %vm931 = vcmp.eq.f32.partialorder %v930, 8.507059e+37
      %v932 = vand.u32 %v913, 2147483648
      %v933 = vor.u32 1.1754944e-38, %v932
      %v934 = vsel %vm931, %v933, %v929
      %v935 = vrcp.pop %v914
      %v936 = vmul.f32 %v914, %v935
      %v937 = vsub.f32 1.0, %v936
      %v938 = vmul.f32 %v935, %v937
      %v939 = vadd.f32 %v935, %v938
      %vm940 = vweird.f32 %v914
      %vm941 = vweird.f32 %v935
      %vm942 = vmor %vm940, %vm941
      %v943 = vsel %vm942, %v935, %v939
      %v944 = vand.u32 2147483647, %v914
      %vm945 = vcmp.eq.f32.partialorder %v944, 8.507059e+37
      %v946 = vand.u32 %v914, 2147483648
      %v947 = vor.u32 1.1754944e-38, %v946
      %v948 = vsel %vm945, %v947, %v943
      %v949 = vrcp.pop %v915
      %v950 = vmul.f32 %v915, %v949
      %v951 = vsub.f32 1.0, %v950
      %v952 = vmul.f32 %v949, %v951
      %v953 = vadd.f32 %v949, %v952
      %vm954 = vweird.f32 %v915
      %vm955 = vweird.f32 %v949
      %vm956 = vmor %vm954, %vm955
      %v957 = vsel %vm956, %v949, %v953
      %v958 = vand.u32 2147483647, %v915
      %vm959 = vcmp.eq.f32.partialorder %v958, 8.507059e+37
      %v960 = vand.u32 %v915, 2147483648
      %v961 = vor.u32 1.1754944e-38, %v960
      %v962 = vsel %vm959, %v961, %v957
      %v963 = vrcp.pop %v916
      %v964 = vmul.f32 %v916, %v963
      %v965 = vsub.f32 1.0, %v964
      %v966 = vmul.f32 %v963, %v965
      %v967 = vadd.f32 %v963, %v966
      %vm968 = vweird.f32 %v916
      %vm969 = vweird.f32 %v963
      %vm970 = vmor %vm968, %vm969
      %v971 = vsel %vm970, %v963, %v967
      %v972 = vand.u32 2147483647, %v916
      %vm973 = vcmp.eq.f32.partialorder %v972, 8.507059e+37
      %v974 = vand.u32 %v916, 2147483648
      %v975 = vor.u32 1.1754944e-38, %v974
      %v976 = vsel %vm973, %v975, %v971
      %v977 = vmul.f32 %v934, 0.996
      %v978 = vmul.f32 %v948, 0.996
      %v979 = vmul.f32 %v962, 0.996
      %v980 = vmul.f32 %v976, 0.996
      %v981 = vsel %vm917, %v977, 1.0
      %v982 = vsel %vm918, %v978, 1.0
      %v983 = vsel %vm919, %v979, 1.0
      %v984 = vsel %vm920, %v980, 1.0
      %v985 = vmul.f32 %v849, %v981
      %v986 = vmul.f32 %v850, %v982
      %v987 = vmul.f32 %v851, %v983
      %v988 = vmul.f32 %v852, %v984
      %989 = vst [vmem:[%s217] sm:$0xff] %v985
      %990 = vst [vmem:[%s217 + $0x8] sm:$0xff] %v986
      %991 = vst [vmem:[%s217 + $0x10] sm:$0xff] %v987
      %992 = vst [vmem:[%s217 + $0x18] sm:$0xff] %v988
      %s993 = smul.u32 4, %s18
      %p994 = scmp.lt.s32.totalorder %s993, 7
      %s995 = scalar_select %p994, %s993, 7
      %s996 = smul.addr %s995, 8
      %s997 = scalar_lea.vmem %s3, %s996
      // Predicated region
      $region33: #{_run.1} parent=31 // pred_check
        %p998 = pneg %p119
      $region34: #{_run.1} parent=31 // pred_check_branch
        %1000 = sbr.rel (%p998) target = $region36
      $region35: #{_run.1} parent=31 // pred_region
        %s1001 = smul.u32 4, %s18
      $region36: #{_run.1} parent=31 // pred_fallthru
        _
    $region32: #{_run.1} parent=5 // pred_fallthru
      _
    %p1002 = scmp.le.s32.totalorder 2, %s9
    // Predicated region
    $region37: #{_run.1} parent=5 // pred_check
      %p1003 = pneg %p1002
    $region38: #{_run.1} parent=5 // pred_check_branch
      %1005 = sbr.rel (%p1003) target = $region40
    $region39: #{_run.1} parent=5 // pred_region
      %s1006 = ssub.s32 %s9, 2
      // Predicated region
      $region41: #{_run.1} parent=39 // pred_check
        %p1007 = pneg %p125
      $region42: #{_run.1} parent=39 // pred_check_branch
        %1009 = sbr.rel (%p1007) target = $region44
      $region43: #{_run.1} parent=39 // pred_region
        %s1010 = smul.u32 4, %s20
        %p1011 = scmp.lt.s32.totalorder %s1010, 7
        %s1012 = scalar_select %p1011, %s1010, 7
        %s1013 = smul.addr %s1012, 8
        %s1014 = scalar_lea.vmem %s3, %s1013
      $region44: #{_run.1} parent=39 // pred_fallthru
        _
    $region40: #{_run.1} parent=5 // pred_fallthru
      _
  $region6: #{_run.1} parent=0 // loop_footer
    %s13 = sadd.s32 1, %s9
  $region7: #{_run.1} parent=0 // loop_footer_branch
    %8 = sbr.rel target = $region3
  $region8: #{_run.1} parent=0 // loop_exit
    _

</llo_original>
